<compile_context>
chip_gen: v7x
topology: tpu7x:2x2x1
jax: 0.10.0
libtpu: 0.0.40
codegen_flags: <defaults>
</compile_context>

<pallas_src>
import functools
import math

import jax
import jax.numpy as jnp
from jax.experimental import pallas as pl
from jax.experimental.pallas import tpu as pltpu


# ------------------------------ fused kernel --------------------------------


def fused_time_mlp_kernel(x_ref, t_ref, *refs, n_layers: int, half_dim: int,
                          freq_scale: float):
    # refs = (W0x, W0sin, W0cos, b0, [W1, b1, W2, b2, ...], out_ref)
    o_ref = refs[-1]
    p = refs[:-1]
    w0x, w0s, w0c, b0 = p[0], p[1], p[2], p[3]

    # Sinusoidal time embedding, computed in-kernel (EUP work, hidden under MXU).
    iota = jax.lax.broadcasted_iota(jnp.int32, (1, half_dim), 1).astype(jnp.float32)
    freqs = jnp.exp(iota * freq_scale)               # [1, half]
    emb = t_ref[...] * freqs                         # [TB, half] (broadcast)
    sin_e = jnp.sin(emb)
    cos_e = jnp.cos(emb)

    # First layer as a split matmul — no concat, no t_emb materialization.
    h = jnp.dot(x_ref[...], w0x[...], preferred_element_type=jnp.float32)
    h = h + jnp.dot(sin_e, w0s[...], preferred_element_type=jnp.float32)
    h = h + jnp.dot(cos_e, w0c[...], preferred_element_type=jnp.float32)
    h = h + b0[...]
    if n_layers > 1:
        h = h * jax.nn.sigmoid(h)                    # fused SiLU

    idx = 4
    for layer in range(1, n_layers):
        w, b = p[idx], p[idx + 1]
        idx += 2
        h = jnp.dot(h, w[...], preferred_element_type=jnp.float32) + b[...]
        if layer < n_layers - 1:
            h = h * jax.nn.sigmoid(h)

    o_ref[...] = h.astype(o_ref.dtype)


# ------------------------------ host wrapper ---------------------------------


def time_mlp_forward(params, x, t, time_dim: int, *, batch_tile: int = 128):
    """params: list of (W [in,out], b [out]); x: [B, input_size]; t: [B] or [B,1]."""
    if t.ndim == 1:
        t = t[:, None]
    x = x.astype(jnp.float32)
    t = t.astype(jnp.float32)
    B, input_size = x.shape

    assert time_dim % 2 == 0 and time_dim >= 4, \
        "time_dim must be even and >= 4 (half-1 in the freq denominator)"
    half = time_dim // 2
    freq_scale = -math.log(10000.0) / (half - 1)

    n_layers = len(params)
    w0, b0 = params[0]
    assert w0.shape[0] == input_size + time_dim
    w0x = w0[:input_size]                       # [input_size, h0]
    w0s = w0[input_size:input_size + half]      # [half, h0]
    w0c = w0[input_size + half:]                # [half, h0]
    output_size = params[-1][0].shape[1]

    # Batch tiling (only parallel dimension).  Weights stay VMEM-resident.
    TB = B if B <= batch_tile else batch_tile
    Bp = B
    if B % TB:
        pad = TB - (B % TB)
        x = jnp.pad(x, ((0, pad), (0, 0)))
        t = jnp.pad(t, ((0, pad), (0, 0)))
        Bp = B + pad
    grid = (Bp // TB,)

    inputs = [x, t, w0x, w0s, w0c, b0.reshape(1, -1)]
    for w, b in params[1:]:
        inputs.extend([w, b.reshape(1, -1)])

    def _batch_spec(cols):
        return pl.BlockSpec((TB, cols), lambda i: (i, 0))

    def _resident_spec(shape):
        # Same block for every grid step -> weight/bias stays resident in VMEM.
        return pl.BlockSpec(shape, lambda i: (0, 0))

    in_specs = [_batch_spec(input_size), _batch_spec(1)]
    in_specs += [_resident_spec(a.shape) for a in inputs[2:]]

    out = pl.pallas_call(
        functools.partial(fused_time_mlp_kernel, n_layers=n_layers,
                          half_dim=half, freq_scale=freq_scale),
        out_shape=jax.ShapeDtypeStruct((Bp, output_size), jnp.float32),
        grid=grid,
        in_specs=in_specs,
        out_specs=_batch_spec(output_size),
        compiler_params=pltpu.CompilerParams(
            dimension_semantics=("parallel",)),
    )(*inputs)
    return out[:B]


# ------------------------------ params / reference ---------------------------


def init_time_mlp_params(key, input_size, hidden_sizes, output_size, time_dim):
    """Mirror nn.Linear default init (U(-1/sqrt(in), 1/sqrt(in))); W stored [in, out]."""
    sizes = [input_size + time_dim, *hidden_sizes, output_size]
    params = []
    for i in range(len(sizes) - 1):
        fan_in, fan_out = sizes[i], sizes[i + 1]
        key, kw, kb = jax.random.split(key, 3)
        bound = 1.0 / math.sqrt(fan_in)
        w = jax.random.uniform(kw, (fan_in, fan_out), jnp.float32, -bound, bound)
        b = jax.random.uniform(kb, (fan_out,), jnp.float32, -bound, bound)
        params.append((w, b))
    return params


def time_mlp_reference(params, x, t, time_dim: int):
    if t.ndim == 1:
        t = t[:, None]
    half = time_dim // 2
    freqs = jnp.exp(
        jnp.arange(half, dtype=jnp.float32) * (-math.log(10000.0) / (half - 1))
    )
    emb = t.astype(jnp.float32) * freqs[None, :]
    t_emb = jnp.concatenate([jnp.sin(emb), jnp.cos(emb)], axis=-1)
    h = jnp.concatenate([x, t_emb], axis=-1)
    n_layers = len(params)
    for i, (w, b) in enumerate(params):
        h = h @ w + b
        if i < n_layers - 1:
            h = h * jax.nn.sigmoid(h)
    return h


# ----------------------------------- main ------------------------------------

if __name__ == "__main__":
    input_size = 16
    hidden_sizes = [32, 32]
    output_size = 8
    time_dim = 16
    batch = 8

    key = jax.random.PRNGKey(0)
    k_params, k_x, k_t = jax.random.split(key, 3)

    params = init_time_mlp_params(
        k_params, input_size, hidden_sizes, output_size, time_dim
    )
    x = jax.random.normal(k_x, (batch, input_size), dtype=jnp.float32)
    t = jax.random.randint(k_t, (batch,), 0, 1000).astype(jnp.float32)

    out = time_mlp_forward(params, x, t, time_dim)
    out = jax.block_until_ready(out)

    ref = time_mlp_reference(params, x, t, time_dim)
    assert out.shape == (batch, output_size)
    assert jnp.allclose(out, ref, atol=1e-4, rtol=1e-4), "mismatch vs reference"

    print("KERNEL_OK")
</pallas_src>

<mosaic_0001>
module attributes {stable_mosaic.version = 11 : i64} {
  func.func @fused_time_mlp_kernel(%arg0: i32, %arg1: memref<8x16xf32, #tpu.memory_space<vmem>>, %arg2: memref<8x1xf32, #tpu.memory_space<vmem>>, %arg3: memref<16x32xf32, #tpu.memory_space<vmem>>, %arg4: memref<8x32xf32, #tpu.memory_space<vmem>>, %arg5: memref<8x32xf32, #tpu.memory_space<vmem>>, %arg6: memref<1x32xf32, #tpu.memory_space<vmem>>, %arg7: memref<32x32xf32, #tpu.memory_space<vmem>>, %arg8: memref<1x32xf32, #tpu.memory_space<vmem>>, %arg9: memref<32x8xf32, #tpu.memory_space<vmem>>, %arg10: memref<1x8xf32, #tpu.memory_space<vmem>>, %arg11: memref<8x8xf32, #tpu.memory_space<vmem>>) attributes {dimension_semantics = [#tpu.dimension_semantics<parallel>], iteration_bounds = array<i64: 1>, scalar_prefetch = 0 : i64, scratch_operands = 0 : i64, tpu.core_type = #tpu.core_type<tc>, window_params = [{transform_indices = @transform_0, window_bounds = array<i64: 8, 16>}, {transform_indices = @transform_1, window_bounds = array<i64: 8, 1>}, {pipeline_mode = #tpu.pipeline_mode<synchronous>, transform_indices = @transform_2, window_bounds = array<i64: 16, 32>}, {pipeline_mode = #tpu.pipeline_mode<synchronous>, transform_indices = @transform_3, window_bounds = array<i64: 8, 32>}, {pipeline_mode = #tpu.pipeline_mode<synchronous>, transform_indices = @transform_4, window_bounds = array<i64: 8, 32>}, {pipeline_mode = #tpu.pipeline_mode<synchronous>, transform_indices = @transform_5, window_bounds = array<i64: 1, 32>}, {pipeline_mode = #tpu.pipeline_mode<synchronous>, transform_indices = @transform_6, window_bounds = array<i64: 32, 32>}, {pipeline_mode = #tpu.pipeline_mode<synchronous>, transform_indices = @transform_7, window_bounds = array<i64: 1, 32>}, {pipeline_mode = #tpu.pipeline_mode<synchronous>, transform_indices = @transform_8, window_bounds = array<i64: 32, 8>}, {pipeline_mode = #tpu.pipeline_mode<synchronous>, transform_indices = @transform_9, window_bounds = array<i64: 1, 8>}, {transform_indices = @transform_10, window_bounds = array<i64: 8, 8>}]} {
    %0 = tpu.iota {dimensions = array<i32: 1>} : vector<1x8xi32>
    %1 = arith.sitofp %0 : vector<1x8xi32> to vector<1x8xf32>
    %cst = arith.constant -1.31576288 : f32
    %2 = vector.broadcast %cst : f32 to vector<1x8xf32>
    %3 = arith.mulf %1, %2 : vector<1x8xf32>
    %4 = math.exp %3 : vector<1x8xf32>
    %c0 = arith.constant 0 : index
    %c0_0 = arith.constant 0 : index
    %5 = vector.load %arg2[%c0, %c0_0] : memref<8x1xf32, #tpu.memory_space<vmem>>, vector<8x1xf32>
    %6 = vector.broadcast %5 : vector<8x1xf32> to vector<8x8xf32>
    %7 = vector.broadcast %4 : vector<1x8xf32> to vector<8x8xf32>
    %8 = arith.mulf %6, %7 : vector<8x8xf32>
    %9 = math.sin %8 : vector<8x8xf32>
    %10 = math.cos %8 : vector<8x8xf32>
    %c0_1 = arith.constant 0 : index
    %c0_2 = arith.constant 0 : index
    %11 = vector.load %arg1[%c0_1, %c0_2] : memref<8x16xf32, #tpu.memory_space<vmem>>, vector<8x16xf32>
    %c0_3 = arith.constant 0 : index
    %c0_4 = arith.constant 0 : index
    %12 = vector.load %arg3[%c0_3, %c0_4] : memref<16x32xf32, #tpu.memory_space<vmem>>, vector<16x32xf32>
    %cst_5 = arith.constant dense<0.000000e+00> : vector<8x32xf32>
    %13 = tpu.matmul %11, %12, %cst_5 {dimension_numbers = #tpu.dot_dimension_numbers<[1], [0], [0], [1], [0, 0, 1, 1], [], []>} : vector<8x16xf32>, vector<16x32xf32>, vector<8x32xf32> -> vector<8x32xf32>
    %c0_6 = arith.constant 0 : index
    %c0_7 = arith.constant 0 : index
    %14 = vector.load %arg4[%c0_6, %c0_7] : memref<8x32xf32, #tpu.memory_space<vmem>>, vector<8x32xf32>
    %cst_8 = arith.constant dense<0.000000e+00> : vector<8x32xf32>
    %15 = tpu.matmul %9, %14, %cst_8 {dimension_numbers = #tpu.dot_dimension_numbers<[1], [0], [0], [1], [0, 0, 1, 1], [], []>} : vector<8x8xf32>, vector<8x32xf32>, vector<8x32xf32> -> vector<8x32xf32>
    %16 = arith.addf %13, %15 : vector<8x32xf32>
    %c0_9 = arith.constant 0 : index
    %c0_10 = arith.constant 0 : index
    %17 = vector.load %arg5[%c0_9, %c0_10] : memref<8x32xf32, #tpu.memory_space<vmem>>, vector<8x32xf32>
    %cst_11 = arith.constant dense<0.000000e+00> : vector<8x32xf32>
    %18 = tpu.matmul %10, %17, %cst_11 {dimension_numbers = #tpu.dot_dimension_numbers<[1], [0], [0], [1], [0, 0, 1, 1], [], []>} : vector<8x8xf32>, vector<8x32xf32>, vector<8x32xf32> -> vector<8x32xf32>
    %19 = arith.addf %16, %18 : vector<8x32xf32>
    %c0_12 = arith.constant 0 : index
    %c0_13 = arith.constant 0 : index
    %20 = vector.load %arg6[%c0_12, %c0_13] : memref<1x32xf32, #tpu.memory_space<vmem>>, vector<1x32xf32>
    %21 = vector.broadcast %20 : vector<1x32xf32> to vector<8x32xf32>
    %22 = arith.addf %19, %21 : vector<8x32xf32>
    %23 = arith.negf %22 : vector<8x32xf32>
    %24 = math.exp %23 : vector<8x32xf32>
    %cst_14 = arith.constant 1.000000e+00 : f32
    %25 = vector.broadcast %cst_14 : f32 to vector<8x32xf32>
    %26 = arith.addf %25, %24 : vector<8x32xf32>
    %27 = arith.divf %25, %26 : vector<8x32xf32>
    %28 = arith.mulf %22, %27 : vector<8x32xf32>
    %c0_15 = arith.constant 0 : index
    %c0_16 = arith.constant 0 : index
    %29 = vector.load %arg7[%c0_15, %c0_16] : memref<32x32xf32, #tpu.memory_space<vmem>>, vector<32x32xf32>
    %cst_17 = arith.constant dense<0.000000e+00> : vector<8x32xf32>
    %30 = tpu.matmul %28, %29, %cst_17 {dimension_numbers = #tpu.dot_dimension_numbers<[1], [0], [0], [1], [0, 0, 1, 1], [], []>} : vector<8x32xf32>, vector<32x32xf32>, vector<8x32xf32> -> vector<8x32xf32>
    %c0_18 = arith.constant 0 : index
    %c0_19 = arith.constant 0 : index
    %31 = vector.load %arg8[%c0_18, %c0_19] : memref<1x32xf32, #tpu.memory_space<vmem>>, vector<1x32xf32>
    %32 = vector.broadcast %31 : vector<1x32xf32> to vector<8x32xf32>
    %33 = arith.addf %30, %32 : vector<8x32xf32>
    %34 = arith.negf %33 : vector<8x32xf32>
    %35 = math.exp %34 : vector<8x32xf32>
    %cst_20 = arith.constant 1.000000e+00 : f32
    %36 = vector.broadcast %cst_20 : f32 to vector<8x32xf32>
    %37 = arith.addf %36, %35 : vector<8x32xf32>
    %38 = arith.divf %36, %37 : vector<8x32xf32>
    %39 = arith.mulf %33, %38 : vector<8x32xf32>
    %c0_21 = arith.constant 0 : index
    %c0_22 = arith.constant 0 : index
    %40 = vector.load %arg9[%c0_21, %c0_22] : memref<32x8xf32, #tpu.memory_space<vmem>>, vector<32x8xf32>
    %cst_23 = arith.constant dense<0.000000e+00> : vector<8x8xf32>
    %41 = tpu.matmul %39, %40, %cst_23 {dimension_numbers = #tpu.dot_dimension_numbers<[1], [0], [0], [1], [0, 0, 1, 1], [], []>} : vector<8x32xf32>, vector<32x8xf32>, vector<8x8xf32> -> vector<8x8xf32>
    %c0_24 = arith.constant 0 : index
    %c0_25 = arith.constant 0 : index
    %42 = vector.load %arg10[%c0_24, %c0_25] : memref<1x8xf32, #tpu.memory_space<vmem>>, vector<1x8xf32>
    %43 = vector.broadcast %42 : vector<1x8xf32> to vector<8x8xf32>
    %44 = arith.addf %41, %43 : vector<8x8xf32>
    %c0_26 = arith.constant 0 : index
    %c0_27 = arith.constant 0 : index
    %45 = vector.load %arg11[%c0_26, %c0_27] : memref<8x8xf32, #tpu.memory_space<vmem>>, vector<8x8xf32>
    tpu.vector_store %arg11[%c0_26, %c0_27], %44 {strides = array<i32>} : memref<8x8xf32, #tpu.memory_space<vmem>>, vector<8x8xf32>,
    return
  }
  func.func @transform_0(%arg0: i32) -> (i32, i32) {
    %c0_i32 = arith.constant 0 : i32
    %c0_i32_0 = arith.constant 0 : i32
    return %arg0, %c0_i32 : i32, i32
  }
  func.func @transform_1(%arg0: i32) -> (i32, i32) {
    %c0_i32 = arith.constant 0 : i32
    %c0_i32_0 = arith.constant 0 : i32
    return %arg0, %c0_i32 : i32, i32
  }
  func.func @transform_2(%arg0: i32) -> (i32, i32) {
    %c0_i32 = arith.constant 0 : i32
    %c0_i32_0 = arith.constant 0 : i32
    %c0_i32_1 = arith.constant 0 : i32
    return %c0_i32, %c0_i32_0 : i32, i32
  }
  func.func @transform_3(%arg0: i32) -> (i32, i32) {
    %c0_i32 = arith.constant 0 : i32
    %c0_i32_0 = arith.constant 0 : i32
    %c0_i32_1 = arith.constant 0 : i32
    return %c0_i32, %c0_i32_0 : i32, i32
  }
  func.func @transform_4(%arg0: i32) -> (i32, i32) {
    %c0_i32 = arith.constant 0 : i32
    %c0_i32_0 = arith.constant 0 : i32
    %c0_i32_1 = arith.constant 0 : i32
    return %c0_i32, %c0_i32_0 : i32, i32
  }
  func.func @transform_5(%arg0: i32) -> (i32, i32) {
    %c0_i32 = arith.constant 0 : i32
    %c0_i32_0 = arith.constant 0 : i32
    %c0_i32_1 = arith.constant 0 : i32
    return %c0_i32, %c0_i32_0 : i32, i32
  }
  func.func @transform_6(%arg0: i32) -> (i32, i32) {
    %c0_i32 = arith.constant 0 : i32
    %c0_i32_0 = arith.constant 0 : i32
    %c0_i32_1 = arith.constant 0 : i32
    return %c0_i32, %c0_i32_0 : i32, i32
  }
  func.func @transform_7(%arg0: i32) -> (i32, i32) {
    %c0_i32 = arith.constant 0 : i32
    %c0_i32_0 = arith.constant 0 : i32
    %c0_i32_1 = arith.constant 0 : i32
    return %c0_i32, %c0_i32_0 : i32, i32
  }
  func.func @transform_8(%arg0: i32) -> (i32, i32) {
    %c0_i32 = arith.constant 0 : i32
    %c0_i32_0 = arith.constant 0 : i32
    %c0_i32_1 = arith.constant 0 : i32
    return %c0_i32, %c0_i32_0 : i32, i32
  }
  func.func @transform_9(%arg0: i32) -> (i32, i32) {
    %c0_i32 = arith.constant 0 : i32
    %c0_i32_0 = arith.constant 0 : i32
    %c0_i32_1 = arith.constant 0 : i32
    return %c0_i32, %c0_i32_0 : i32, i32
  }
  func.func @transform_10(%arg0: i32) -> (i32, i32) {
    %c0_i32 = arith.constant 0 : i32
    %c0_i32_0 = arith.constant 0 : i32
    return %arg0, %c0_i32 : i32, i32
  }
}

</mosaic_0001>

<llo_original>
// kernel: tpu_custom_call.1
$region0: #{tpu_custom_call.1}
  #allocation0 [shape = 'u32[]', space=smem, size = 0x4, offset = 0x4, fixed_abs, tag = 'smem constant byte address 0x4 - core index']
  #allocation1 [shape = 'u32[144,128]{1,0:T(1,128)}', space=vmem, size = 0x12000, scoped, tag = 'internal scratch']
  %s0 = inlined_call_operand.vmem [shape: f32[8,16], index: 0, kind: input, shape index: {}]
  %s1 = inlined_call_operand.vmem [shape: f32[8,1], index: 1, kind: input, shape index: {}]
  %s2 = inlined_call_operand.vmem [shape: f32[16,32], index: 2, kind: input, shape index: {}]
  %s3 = inlined_call_operand.hbm [shape: f32[8,32], index: 3, kind: input, shape index: {}]
  %s4 = inlined_call_operand.hbm [shape: f32[8,32], index: 4, kind: input, shape index: {}]
  %s5 = inlined_call_operand.vmem [shape: f32[1,32], index: 5, kind: input, shape index: {}]
  %s6 = inlined_call_operand.vmem [shape: f32[32,32], index: 6, kind: input, shape index: {}]
  %s7 = inlined_call_operand.vmem [shape: f32[1,32], index: 7, kind: input, shape index: {}]
  %s8 = inlined_call_operand.vmem [shape: f32[32,8], index: 8, kind: input, shape index: {}]
  %s9 = inlined_call_operand.vmem [shape: f32[1,8], index: 9, kind: input, shape index: {}]
  %s10 = inlined_call_operand.hbm [shape: f32[8,8], index: 10, kind: output, shape index: {}]
  %s11 = sld [smem:[#allocation0]]
  $region58: #{tpu_custom_call.1} parent=0
    _
  %s13 = ssub.s32 1, %s11
  %s14 = scalar_select 0, %s13, %s11
  $region1: #{tpu_custom_call.1} parent=0
    #allocation2 [shape = 'u8[4096]{0}', space=vmem, size = 0x1000, scoped, tag = 'input window, operand 3, single buffered']
    #allocation3 [shape = 's32[1]{0}', space=sflag, size = 0x4, scoped, tag = 'scoped memory for tpu_custom_call.1']
    #allocation4 [shape = 's32[1]{0}', space=sflag, size = 0x4, scoped, tag = 'scoped memory for tpu_custom_call.1']
    #allocation5 [shape = 'u8[4096]{0}', space=vmem, size = 0x1000, scoped, tag = 'input window, operand 4, single buffered']
    #allocation6 [shape = 's32[1]{0}', space=sflag, size = 0x4, scoped, tag = 'scoped memory for tpu_custom_call.1']
    #allocation7 [shape = 'u8[4096]{0}', space=vmem, size = 0x1000, scoped, tag = 'output window, operand 0, single buffered']
    %15 = vsyncpa [#allocation3], 0
    %16 = vsyncpa [#allocation6], 0
    %17 = vsyncpa [#allocation4], 0
    // Predicated region
    $region2: #{tpu_custom_call.1} parent=1 // pred_check
      _
    $region3: #{tpu_custom_call.1} parent=1 // pred_check_branch
      %19 = sbr.rel (0) target = $region5
    $region4: #{tpu_custom_call.1} parent=1 // pred_region
      _
    $region5: #{tpu_custom_call.1} parent=1 // pred_fallthru
      _
    // Predicated region
    $region6: #{tpu_custom_call.1} parent=1 // pred_check
      _
    $region7: #{tpu_custom_call.1} parent=1 // pred_check_branch
      %21 = sbr.rel (0) target = $region9
    $region8: #{tpu_custom_call.1} parent=1 // pred_region
      _
    $region9: #{tpu_custom_call.1} parent=1 // pred_fallthru
      _
    // Predicated region
    $region10: #{tpu_custom_call.1} parent=1 // pred_check
      _
    $region11: #{tpu_custom_call.1} parent=1 // pred_check_branch
      %23 = sbr.rel (0) target = $region13
    $region12: #{tpu_custom_call.1} parent=1 // pred_region
      _
    $region13: #{tpu_custom_call.1} parent=1 // pred_fallthru
      _
    // Predicated region
    $region14: #{tpu_custom_call.1} parent=1 // pred_check
      _
    $region15: #{tpu_custom_call.1} parent=1 // pred_check_branch
      %25 = sbr.rel (0) target = $region17
    $region16: #{tpu_custom_call.1} parent=1 // pred_region
      %s27 = ssub.s32 128, 128
      %28 = vsyncadd [#allocation3], %s27
      %s30 = sshll.u32 [#allocation2], 4
      %s31 = int_to_ptr.vmem [resolvable:$true] %s30
      %33 = dma.hbm_to_vmem [thread:$0]  %s3, 128, %s31, [#allocation3]
    $region17: #{tpu_custom_call.1} parent=1 // pred_fallthru
      _
    // Predicated region
    $region18: #{tpu_custom_call.1} parent=1 // pred_check
      _
    $region19: #{tpu_custom_call.1} parent=1 // pred_check_branch
      %35 = sbr.rel (0) target = $region21
    $region20: #{tpu_custom_call.1} parent=1 // pred_region
      %s37 = ssub.s32 128, 128
      %38 = vsyncadd [#allocation6], %s37
      %s40 = sshll.u32 [#allocation5], 4
      %s41 = int_to_ptr.vmem [resolvable:$true] %s40
      %43 = dma.hbm_to_vmem [thread:$0]  %s4, 128, %s41, [#allocation6]
    $region21: #{tpu_custom_call.1} parent=1 // pred_fallthru
      _
    // Predicated region
    $region22: #{tpu_custom_call.1} parent=1 // pred_check
      _
    $region23: #{tpu_custom_call.1} parent=1 // pred_check_branch
      %45 = sbr.rel (0) target = $region25
    $region24: #{tpu_custom_call.1} parent=1 // pred_region
      _
    $region25: #{tpu_custom_call.1} parent=1 // pred_fallthru
      _
    // Predicated region
    $region26: #{tpu_custom_call.1} parent=1 // pred_check
      _
    $region27: #{tpu_custom_call.1} parent=1 // pred_check_branch
      %47 = sbr.rel (0) target = $region29
    $region28: #{tpu_custom_call.1} parent=1 // pred_region
      _
    $region29: #{tpu_custom_call.1} parent=1 // pred_fallthru
      _
    // Predicated region
    $region30: #{tpu_custom_call.1} parent=1 // pred_check
      _
    $region31: #{tpu_custom_call.1} parent=1 // pred_check_branch
      %49 = sbr.rel (0) target = $region33
    $region32: #{tpu_custom_call.1} parent=1 // pred_region
      _
    $region33: #{tpu_custom_call.1} parent=1 // pred_fallthru
      _
    // Predicated region
    $region34: #{tpu_custom_call.1} parent=1 // pred_check
      _
    $region35: #{tpu_custom_call.1} parent=1 // pred_check_branch
      %51 = sbr.rel (0) target = $region37
    $region36: #{tpu_custom_call.1} parent=1 // pred_region
      _
    $region37: #{tpu_custom_call.1} parent=1 // pred_fallthru
      _
    // Predicated region
    $region38: #{tpu_custom_call.1} parent=1 // pred_check
      _
    $region39: #{tpu_custom_call.1} parent=1 // pred_check_branch
      %53 = sbr.rel (0) target = $region41
    $region40: #{tpu_custom_call.1} parent=1 // pred_region
      _
    $region41: #{tpu_custom_call.1} parent=1 // pred_fallthru
      _
    // Predicated region
    $region42: #{tpu_custom_call.1} parent=1 // pred_check
      _
    $region43: #{tpu_custom_call.1} parent=1 // pred_check_branch
      %55 = sbr.rel (0) target = $region45
    $region44: #{tpu_custom_call.1} parent=1 // pred_region
      %56 = dma.done [#allocation3], 128
    $region45: #{tpu_custom_call.1} parent=1 // pred_fallthru
      _
    // Predicated region
    $region46: #{tpu_custom_call.1} parent=1 // pred_check
      _
    $region47: #{tpu_custom_call.1} parent=1 // pred_check_branch
      %58 = sbr.rel (0) target = $region49
    $region48: #{tpu_custom_call.1} parent=1 // pred_region
      %59 = dma.done [#allocation6], 128
    $region49: #{tpu_custom_call.1} parent=1 // pred_fallthru
      _
    %v60 = vlaneseq
    %v61 = vand.u32 %v60, 127
    %v62 = vcvt.s32.f32 %v61
    %v63 = vmul.f32 %v62, -1.3157629
    %v64 = vmul.f32 %v63, 1.442695
    %v65 = vpow.pop %v64
    %v66 = vld [vmem:[%s1] sm:$0xff]
    %68 = vset.pattern.permute.xlu0 0
    %69 = vperm.xlu0 %68, %v66
    %v70 = vpop.permute.xlu0 %69
    %v72 = vmul.f32 %v70, %v65
    %v73 = vand.u32 2147483647, %v72
    %vm74 = vcmp.le.f32.partialorder %v73, 0.7853982
    %vm75 = vcmp.lt.s32.totalorder %v72, 0
    %v76 = vand.u32 %v72, 2139095040
    %v77 = vshrl.u32 %v76, 23
    %v78 = vsub.s32 %v77, 127
    %v79 = vand.u32 2147483647, %v72
    %v80 = vand.u32 %v79, 8388607
    %v81 = vor.u32 %v80, 8388608
    %v82 = vsub.s32 0, %v81
    %v83 = vadd.s32 %v78, 1
    %vm84 = vcmp.gt.s32.totalorder %v83, 0
    %v85 = vsel %vm84, %v83, 0
    %v86 = vshrl.u32 %v85, 5
    %v87 = vand.u32 %v85, 31
    %v88 = vsub.s32 32, %v87
    %v89 = vshrl.u32 683565275, %v88
    %v90 = vshll.u32 683565275, %v87
    %v91 = vshrl.u32 2475754826, %v88
    %v92 = vor.u32 %v90, %v91
    %v93 = vshll.u32 2475754826, %v87
    %v94 = vshrl.u32 2131351028, %v88
    %v95 = vor.u32 %v93, %v94
    %v96 = vshll.u32 2131351028, %v87
    %v97 = vshrl.u32 2102212464, %v88
    %v98 = vor.u32 %v96, %v97
    %v99 = vshll.u32 2102212464, %v87
    %v100 = vshrl.u32 920167782, %v88
    %v101 = vor.u32 %v99, %v100
    %v102 = vshll.u32 920167782, %v87
    %v103 = vshrl.u32 1326507024, %v88
    %v104 = vor.u32 %v102, %v103
    %vm105 = vcmp.lt.s32.totalorder %v86, 1
    %vm106 = vcmp.lt.s32.totalorder %v86, 2
    %vm107 = vcmp.lt.s32.totalorder %v86, 3
    %vm108 = vcmp.lt.s32.totalorder %v86, 4
    %v109 = vsel %vm105, %v89, %v92
    %v110 = vsel %vm108, %v98, 2102212464
    %v111 = vsel %vm107, %v95, %v110
    %v112 = vsel %vm106, %v109, %v111
    %v113 = vsel %vm105, %v92, %v95
    %v114 = vsel %vm108, %v101, 920167782
    %v115 = vsel %vm107, %v98, %v114
    %v116 = vsel %vm106, %v113, %v115
    %v117 = vsel %vm105, %v95, %v98
    %v118 = vsel %vm108, %v104, 1326507024
    %v119 = vsel %vm107, %v101, %v118
    %v120 = vsel %vm106, %v117, %v119
    %v121 = vshll.u32 %v81, 8
    %v122 = vmul.u32.u64.compose %v121, %v120
    %v123 = vextract.low.u32 %v122
    %v124 = vextract.high.u32 %v122
    %v125 = vmul.u32.u64.compose %v121, %v116
    %v126 = vextract.low.u32 %v125
    %v127 = vextract.high.u32 %v125
    %v128 = vmul.u32 %v121, %v112
    %v129 = vadd.s32 %v124, %v126
    %vm130 = vc.u32 %v124, %v126
    %v131 = vadd.s32 %v127, 1
    %v132 = vsel %vm130, %v131, %v127
    %v133 = vadd.s32 %v128, %v132
    %v134 = vadd.s32 %v133, 536870912
    %v135 = vshrl.u32 %v134, 30
    %v136 = vshll.u32 %v135, 30
    %v137 = vsub.s32 %v133, %v136
    %vm138 = vcmp.lt.s32.totalorder %v137, 0
    %v139 = vsub.s32 0, %v137
    %v140 = vsel %vm138, %v139, %v137
    %v141 = vclz %v140
    %v142 = vsub.s32 %v141, 2
    %vm143 = vcmp.gt.s32.totalorder 0, %v142
    %v144 = vsel %vm143, 0, %v142
    %v145 = vsub.s32 32, %v144
    %v146 = vshll.u32 %v137, %v144
    %v147 = vshrl.u32 %v129, %v145
    %v148 = vor.u32 %v146, %v147
    %v149 = vsub.s32 4294967266, %v144
    %v150 = vadd.s32 %v149, 127
    %v151 = vshll.u32 %v150, 23
    %v152 = vor.u32 4788187, %v151
    %v153 = vand.u32 2147483647, %v152
    %v155 = vcvt.s32.f32 %v148
    %v156 = vmul.f32 %v155, %v153
    %v157 = vxor.u32 %v156, 2147483648
    %v158 = vsel %vm75, %v157, %v156
    %v159 = vsub.s32 4, %v135
    %v160 = vsel %vm75, %v159, %v135
    %v161 = vsel %vm74, %v72, %v158
    %v162 = vsel %vm74, 0, %v160
    %v163 = vcosq.f32.pop %v161
    %v164 = vsinq.f32.pop %v161
    %vm165 = vweird.f32 %v72
    %v166 = vadd.s32 %v162, 3
    %v167 = vand.u32 %v166, 3
    %vm168 = vcmp.lt.s32.totalorder %v167, 2
    %vm169 = vcmp.eq.s32.totalorder %v167, 0
    %v170 = vxor.u32 %v164, 2147483648
    %v171 = vsel %vm169, %v163, %v170
    %vm172 = vcmp.eq.s32.totalorder %v167, 2
    %v173 = vxor.u32 %v163, 2147483648
    %v174 = vsel %vm172, %v173, %v164
    %v175 = vsel %vm168, %v171, %v174
    %v176 = vsel %vm165, nan, %v175
    %v177 = vand.u32 2147483647, %v72
    %vm178 = vcmp.le.f32.partialorder %v177, 0.7853982
    %vm179 = vcmp.lt.s32.totalorder %v72, 0
    %v180 = vand.u32 %v72, 2139095040
    %v181 = vshrl.u32 %v180, 23
    %v182 = vsub.s32 %v181, 127
    %v183 = vand.u32 2147483647, %v72
    %v184 = vand.u32 %v183, 8388607
    %v185 = vor.u32 %v184, 8388608
    %v186 = vsub.s32 0, %v185
    %v187 = vadd.s32 %v182, 1
    %vm188 = vcmp.gt.s32.totalorder %v187, 0
    %v189 = vsel %vm188, %v187, 0
    %v190 = vshrl.u32 %v189, 5
    %v191 = vand.u32 %v189, 31
    %v192 = vsub.s32 32, %v191
    %v193 = vshrl.u32 683565275, %v192
    %v194 = vshll.u32 683565275, %v191
    %v195 = vshrl.u32 2475754826, %v192
    %v196 = vor.u32 %v194, %v195
    %v197 = vshll.u32 2475754826, %v191
    %v198 = vshrl.u32 2131351028, %v192
    %v199 = vor.u32 %v197, %v198
    %v200 = vshll.u32 2131351028, %v191
    %v201 = vshrl.u32 2102212464, %v192
    %v202 = vor.u32 %v200, %v201
    %v203 = vshll.u32 2102212464, %v191
    %v204 = vshrl.u32 920167782, %v192
    %v205 = vor.u32 %v203, %v204
    %v206 = vshll.u32 920167782, %v191
    %v207 = vshrl.u32 1326507024, %v192
    %v208 = vor.u32 %v206, %v207
    %vm209 = vcmp.lt.s32.totalorder %v190, 1
    %vm210 = vcmp.lt.s32.totalorder %v190, 2
    %vm211 = vcmp.lt.s32.totalorder %v190, 3
    %vm212 = vcmp.lt.s32.totalorder %v190, 4
    %v213 = vsel %vm209, %v193, %v196
    %v214 = vsel %vm212, %v202, 2102212464
    %v215 = vsel %vm211, %v199, %v214
    %v216 = vsel %vm210, %v213, %v215
    %v217 = vsel %vm209, %v196, %v199
    %v218 = vsel %vm212, %v205, 920167782
    %v219 = vsel %vm211, %v202, %v218
    %v220 = vsel %vm210, %v217, %v219
    %v221 = vsel %vm209, %v199, %v202
    %v222 = vsel %vm212, %v208, 1326507024
    %v223 = vsel %vm211, %v205, %v222
    %v224 = vsel %vm210, %v221, %v223
    %v225 = vshll.u32 %v185, 8
    %v226 = vmul.u32.u64.compose %v225, %v224
    %v227 = vextract.low.u32 %v226
    %v228 = vextract.high.u32 %v226
    %v229 = vmul.u32.u64.compose %v225, %v220
    %v230 = vextract.low.u32 %v229
    %v231 = vextract.high.u32 %v229
    %v232 = vmul.u32 %v225, %v216
    %v233 = vadd.s32 %v228, %v230
    %vm234 = vc.u32 %v228, %v230
    %v235 = vadd.s32 %v231, 1
    %v236 = vsel %vm234, %v235, %v231
    %v237 = vadd.s32 %v232, %v236
    %v238 = vadd.s32 %v237, 536870912
    %v239 = vshrl.u32 %v238, 30
    %v240 = vshll.u32 %v239, 30
    %v241 = vsub.s32 %v237, %v240
    %vm242 = vcmp.lt.s32.totalorder %v241, 0
    %v243 = vsub.s32 0, %v241
    %v244 = vsel %vm242, %v243, %v241
    %v245 = vclz %v244
    %v246 = vsub.s32 %v245, 2
    %vm247 = vcmp.gt.s32.totalorder 0, %v246
    %v248 = vsel %vm247, 0, %v246
    %v249 = vsub.s32 32, %v248
    %v250 = vshll.u32 %v241, %v248
    %v251 = vshrl.u32 %v233, %v249
    %v252 = vor.u32 %v250, %v251
    %v253 = vsub.s32 4294967266, %v248
    %v254 = vadd.s32 %v253, 127
    %v255 = vshll.u32 %v254, 23
    %v256 = vor.u32 4788187, %v255
    %v257 = vand.u32 2147483647, %v256
    %v259 = vcvt.s32.f32 %v252
    %v260 = vmul.f32 %v259, %v257
    %v261 = vxor.u32 %v260, 2147483648
    %v262 = vsel %vm179, %v261, %v260
    %v263 = vsub.s32 4, %v239
    %v264 = vsel %vm179, %v263, %v239
    %v265 = vsel %vm178, %v72, %v262
    %v266 = vsel %vm178, 0, %v264
    %v267 = vcosq.f32.pop %v265
    %v268 = vsinq.f32.pop %v265
    %vm269 = vweird.f32 %v72
    %v270 = vand.u32 %v266, 3
    %vm271 = vcmp.lt.s32.totalorder %v270, 2
    %vm272 = vcmp.eq.s32.totalorder %v270, 0
    %v273 = vxor.u32 %v268, 2147483648
    %v274 = vsel %vm272, %v267, %v273
    %vm275 = vcmp.eq.s32.totalorder %v270, 2
    %v276 = vxor.u32 %v267, 2147483648
    %v277 = vsel %vm275, %v276, %v268
    %v278 = vsel %vm271, %v274, %v277
    %v279 = vsel %vm269, nan, %v278
    %v280 = vld [vmem:[%s0] sm:$0xff]
    %v281 = vld [vmem:[%s2] sm:$0xff]
    %v282 = vld [vmem:[%s2 + $0x8] sm:$0xff]
    %v283 = vld [vmem:[#allocation2] sm:$0xff]
    %vm284 = vcmask 64512
    %v286 = vsel %vm284, %v176, 0
    %288 = vmatprep.subr.mxu0 0.0
    %289 = vmatpush1.msra.mxu0 %v283
    %290 = vmatprep.subr.mxu0 0.0
    %291 = vmatpush1.msra.mxu0 0.0
    %292 = vmatprep.subr.mxu0 0.0
    %293 = vmatpush1.msra.mxu0 0.0
    %294 = vmatprep.subr.mxu0 0.0
    %295 = vmatpush1.msra.mxu0 0.0
    %296 = vmatprep.subr.mxu0 0.0
    %297 = vmatpush1.msra.mxu0 0.0
    %298 = vmatprep.subr.mxu0 0.0
    %299 = vmatpush1.msra.mxu0 0.0
    %300 = vmatprep.subr.mxu0 0.0
    %301 = vmatpush1.msra.mxu0 0.0
    %302 = vmatprep.subr.mxu0 0.0
    %303 = vmatpush1.msra.mxu0 0.0
    %304 = vmatprep.subr.mxu0 0.0
    %305 = vmatpush1.msra.mxu0 0.0
    %306 = vmatprep.subr.mxu0 0.0
    %307 = vmatpush1.msra.mxu0 0.0
    %308 = vmatprep.subr.mxu0 0.0
    %309 = vmatpush1.msra.mxu0 0.0
    %310 = vmatprep.subr.mxu0 0.0
    %311 = vmatpush1.msra.mxu0 0.0
    %312 = vmatprep.subr.mxu0 0.0
    %313 = vmatpush1.msra.mxu0 0.0
    %314 = vmatprep.subr.mxu0 0.0
    %315 = vmatpush1.msra.mxu0 0.0
    %316 = vmatprep.subr.mxu0 0.0
    %317 = vmatpush1.msra.mxu0 0.0
    %318 = vmatprep.subr.mxu0 0.0
    %319 = vmatpush1.msra.mxu0 0.0
    %320 = vmatprep.subr.mxu0 0.0
    %321 = vmatpush1.msra.mxu0 0.0
    %322 = vmatprep.subr.mxu0 0.0
    %323 = vmatpush1.msra.mxu0 0.0
    %324 = vmatprep.subr.mxu0 0.0
    %325 = vmatpush1.msra.mxu0 0.0
    %326 = vmatprep.subr.mxu0 0.0
    %327 = vmatpush1.msra.mxu0 0.0
    %328 = vmatprep.subr.mxu0 0.0
    %329 = vmatpush1.msra.mxu0 0.0
    %330 = vmatprep.subr.mxu0 0.0
    %331 = vmatpush1.msra.mxu0 0.0
    %332 = vmatprep.subr.mxu0 0.0
    %333 = vmatpush1.msra.mxu0 0.0
    %334 = vmatprep.subr.mxu0 0.0
    %335 = vmatpush1.msra.mxu0 0.0
    %336 = vmatprep.subr.mxu0 0.0
    %337 = vmatpush1.msra.mxu0 0.0
    %338 = vmatprep.subr.mxu0 0.0
    %339 = vmatpush1.msra.mxu0 0.0
    %340 = vmatprep.subr.mxu0 0.0
    %341 = vmatpush1.msra.mxu0 0.0
    %342 = vmatprep.subr.mxu0 0.0
    %343 = vmatpush1.msra.mxu0 0.0
    %344 = vmatprep.subr.mxu0 0.0
    %345 = vmatpush1.msra.mxu0 0.0
    %346 = vmatprep.subr.mxu0 0.0
    %347 = vmatpush1.msra.mxu0 0.0
    %348 = vmatprep.subr.mxu0 0.0
    %349 = vmatpush1.msra.mxu0 0.0
    %350 = vmatprep.subr.mxu0 0.0
    %351 = vmatpush1.msra.mxu0 0.0
    %352 = vmatprep.mubr.f32.mxu0 0.0
    %353 = vmatmul.mubr.f32.gmra.mrb[0].mxu0 %v286
    %v354 = vpop.f32.mrb[0].mxu0
    %v355 = vadd.f32 0.0, %v354
    %v356 = vpop.f32.mrb[0].mxu0
    %357 = vdwg.mxu0
    %vm358 = vcmask 130048
    %v360 = vsel %vm358, %v280, 0
    %362 = vmatprep.subr.mxu0 0.0
    %363 = vmatpush1.msra.mxu0 %v281
    %364 = vmatprep.subr.mxu0 0.0
    %365 = vmatpush1.msra.mxu0 %v282
    %366 = vmatprep.subr.mxu0 0.0
    %367 = vmatpush1.msra.mxu0 0.0
    %368 = vmatprep.subr.mxu0 0.0
    %369 = vmatpush1.msra.mxu0 0.0
    %370 = vmatprep.subr.mxu0 0.0
    %371 = vmatpush1.msra.mxu0 0.0
    %372 = vmatprep.subr.mxu0 0.0
    %373 = vmatpush1.msra.mxu0 0.0
    %374 = vmatprep.subr.mxu0 0.0
    %375 = vmatpush1.msra.mxu0 0.0
    %376 = vmatprep.subr.mxu0 0.0
    %377 = vmatpush1.msra.mxu0 0.0
    %378 = vmatprep.subr.mxu0 0.0
    %379 = vmatpush1.msra.mxu0 0.0
    %380 = vmatprep.subr.mxu0 0.0
    %381 = vmatpush1.msra.mxu0 0.0
    %382 = vmatprep.subr.mxu0 0.0
    %383 = vmatpush1.msra.mxu0 0.0
    %384 = vmatprep.subr.mxu0 0.0
    %385 = vmatpush1.msra.mxu0 0.0
    %386 = vmatprep.subr.mxu0 0.0
    %387 = vmatpush1.msra.mxu0 0.0
    %388 = vmatprep.subr.mxu0 0.0
    %389 = vmatpush1.msra.mxu0 0.0
    %390 = vmatprep.subr.mxu0 0.0
    %391 = vmatpush1.msra.mxu0 0.0
    %392 = vmatprep.subr.mxu0 0.0
    %393 = vmatpush1.msra.mxu0 0.0
    %394 = vmatprep.subr.mxu0 0.0
    %395 = vmatpush1.msra.mxu0 0.0
    %396 = vmatprep.subr.mxu0 0.0
    %397 = vmatpush1.msra.mxu0 0.0
    %398 = vmatprep.subr.mxu0 0.0
    %399 = vmatpush1.msra.mxu0 0.0
    %400 = vmatprep.subr.mxu0 0.0
    %401 = vmatpush1.msra.mxu0 0.0
    %402 = vmatprep.subr.mxu0 0.0
    %403 = vmatpush1.msra.mxu0 0.0
    %404 = vmatprep.subr.mxu0 0.0
    %405 = vmatpush1.msra.mxu0 0.0
    %406 = vmatprep.subr.mxu0 0.0
    %407 = vmatpush1.msra.mxu0 0.0
    %408 = vmatprep.subr.mxu0 0.0
    %409 = vmatpush1.msra.mxu0 0.0
    %410 = vmatprep.subr.mxu0 0.0
    %411 = vmatpush1.msra.mxu0 0.0
    %412 = vmatprep.subr.mxu0 0.0
    %413 = vmatpush1.msra.mxu0 0.0
    %414 = vmatprep.subr.mxu0 0.0
    %415 = vmatpush1.msra.mxu0 0.0
    %416 = vmatprep.subr.mxu0 0.0
    %417 = vmatpush1.msra.mxu0 0.0
    %418 = vmatprep.subr.mxu0 0.0
    %419 = vmatpush1.msra.mxu0 0.0
    %420 = vmatprep.subr.mxu0 0.0
    %421 = vmatpush1.msra.mxu0 0.0
    %422 = vmatprep.subr.mxu0 0.0
    %423 = vmatpush1.msra.mxu0 0.0
    %424 = vmatprep.subr.mxu0 0.0
    %425 = vmatpush1.msra.mxu0 0.0
    %426 = vmatprep.mubr.f32.mxu0 0.0
    %427 = vmatmul.mubr.f32.gmra.mrb[0].mxu0 %v360
    %v428 = vpop.f32.mrb[0].mxu0
    %v429 = vadd.f32 %v355, %v428
    %v430 = vpop.f32.mrb[0].mxu0
    %431 = vdwg.mxu0
    %v432 = vld [vmem:[#allocation5] sm:$0xff]
    %v434 = vsel %vm284, %v279, 0
    %436 = vmatprep.subr.mxu0 0.0
    %437 = vmatpush1.msra.mxu0 %v432
    %438 = vmatprep.subr.mxu0 0.0
    %439 = vmatpush1.msra.mxu0 0.0
    %440 = vmatprep.subr.mxu0 0.0
    %441 = vmatpush1.msra.mxu0 0.0
    %442 = vmatprep.subr.mxu0 0.0
    %443 = vmatpush1.msra.mxu0 0.0
    %444 = vmatprep.subr.mxu0 0.0
    %445 = vmatpush1.msra.mxu0 0.0
    %446 = vmatprep.subr.mxu0 0.0
    %447 = vmatpush1.msra.mxu0 0.0
    %448 = vmatprep.subr.mxu0 0.0
    %449 = vmatpush1.msra.mxu0 0.0
    %450 = vmatprep.subr.mxu0 0.0
    %451 = vmatpush1.msra.mxu0 0.0
    %452 = vmatprep.subr.mxu0 0.0
    %453 = vmatpush1.msra.mxu0 0.0
    %454 = vmatprep.subr.mxu0 0.0
    %455 = vmatpush1.msra.mxu0 0.0
    %456 = vmatprep.subr.mxu0 0.0
    %457 = vmatpush1.msra.mxu0 0.0
    %458 = vmatprep.subr.mxu0 0.0
    %459 = vmatpush1.msra.mxu0 0.0
    %460 = vmatprep.subr.mxu0 0.0
    %461 = vmatpush1.msra.mxu0 0.0
    %462 = vmatprep.subr.mxu0 0.0
    %463 = vmatpush1.msra.mxu0 0.0
    %464 = vmatprep.subr.mxu0 0.0
    %465 = vmatpush1.msra.mxu0 0.0
    %466 = vmatprep.subr.mxu0 0.0
    %467 = vmatpush1.msra.mxu0 0.0
    %468 = vmatprep.subr.mxu0 0.0
    %469 = vmatpush1.msra.mxu0 0.0
    %470 = vmatprep.subr.mxu0 0.0
    %471 = vmatpush1.msra.mxu0 0.0
    %472 = vmatprep.subr.mxu0 0.0
    %473 = vmatpush1.msra.mxu0 0.0
    %474 = vmatprep.subr.mxu0 0.0
    %475 = vmatpush1.msra.mxu0 0.0
    %476 = vmatprep.subr.mxu0 0.0
    %477 = vmatpush1.msra.mxu0 0.0
    %478 = vmatprep.subr.mxu0 0.0
    %479 = vmatpush1.msra.mxu0 0.0
    %480 = vmatprep.subr.mxu0 0.0
    %481 = vmatpush1.msra.mxu0 0.0
    %482 = vmatprep.subr.mxu0 0.0
    %483 = vmatpush1.msra.mxu0 0.0
    %484 = vmatprep.subr.mxu0 0.0
    %485 = vmatpush1.msra.mxu0 0.0
    %486 = vmatprep.subr.mxu0 0.0
    %487 = vmatpush1.msra.mxu0 0.0
    %488 = vmatprep.subr.mxu0 0.0
    %489 = vmatpush1.msra.mxu0 0.0
    %490 = vmatprep.subr.mxu0 0.0
    %491 = vmatpush1.msra.mxu0 0.0
    %492 = vmatprep.subr.mxu0 0.0
    %493 = vmatpush1.msra.mxu0 0.0
    %494 = vmatprep.subr.mxu0 0.0
    %495 = vmatpush1.msra.mxu0 0.0
    %496 = vmatprep.subr.mxu0 0.0
    %497 = vmatpush1.msra.mxu0 0.0
    %498 = vmatprep.subr.mxu0 0.0
    %499 = vmatpush1.msra.mxu0 0.0
    %500 = vmatprep.mubr.f32.mxu0 0.0
    %501 = vmatmul.mubr.f32.gmra.mrb[0].mxu0 %v434
    %v502 = vpop.f32.mrb[0].mxu0
    %v503 = vadd.f32 0.0, %v502
    %v504 = vpop.f32.mrb[0].mxu0
    %505 = vdwg.mxu0
    %v506 = vadd.f32 %v429, %v503
    %v507 = vld [vmem:[%s5] sm:$0x1]
    %v509 = vlaneseq
    %v510 = vshrl.u32 %v509, 7
    %v511 = vsub.s32 0, %v510
    %v512 = vrot.slane %v507, %v511
    %v514 = vadd.f32 %v506, %v512
    %v515 = vxor.u32 %v514, 2147483648
    %v516 = vmul.f32 %v515, 1.442695
    %v517 = vpow.pop %v516
    %v518 = vadd.f32 %v517, 1.0
    %v519 = vrcp.pop %v518
    %v520 = vmul.f32 1.0, %v519
    %v521 = vmul.f32 %v514, %v520
    %v522 = vld [vmem:[%s6] sm:$0xff]
    %v523 = vld [vmem:[%s6 + $0x8] sm:$0xff]
    %v524 = vld [vmem:[%s6 + $0x10] sm:$0xff]
    %v525 = vld [vmem:[%s6 + $0x18] sm:$0xff]
    %v526 = vld [vmem:[%s7] sm:$0x1]
    %v528 = vlaneseq
    %v529 = vshrl.u32 %v528, 7
    %v530 = vsub.s32 0, %v529
    %v531 = vrot.slane %v526, %v530
    %vm533 = vcmask 261120
    %v535 = vsel %vm533, %v521, 0
    %537 = vmatprep.subr.mxu0 0.0
    %538 = vmatpush1.msra.mxu0 %v522
    %539 = vmatprep.subr.mxu0 0.0
    %540 = vmatpush1.msra.mxu0 %v523
    %541 = vmatprep.subr.mxu0 0.0
    %542 = vmatpush1.msra.mxu0 %v524
    %543 = vmatprep.subr.mxu0 0.0
    %544 = vmatpush1.msra.mxu0 %v525
    %545 = vmatprep.subr.mxu0 0.0
    %546 = vmatpush1.msra.mxu0 0.0
    %547 = vmatprep.subr.mxu0 0.0
    %548 = vmatpush1.msra.mxu0 0.0
    %549 = vmatprep.subr.mxu0 0.0
    %550 = vmatpush1.msra.mxu0 0.0
    %551 = vmatprep.subr.mxu0 0.0
    %552 = vmatpush1.msra.mxu0 0.0
    %553 = vmatprep.subr.mxu0 0.0
    %554 = vmatpush1.msra.mxu0 0.0
    %555 = vmatprep.subr.mxu0 0.0
    %556 = vmatpush1.msra.mxu0 0.0
    %557 = vmatprep.subr.mxu0 0.0
    %558 = vmatpush1.msra.mxu0 0.0
    %559 = vmatprep.subr.mxu0 0.0
    %560 = vmatpush1.msra.mxu0 0.0
    %561 = vmatprep.subr.mxu0 0.0
    %562 = vmatpush1.msra.mxu0 0.0
    %563 = vmatprep.subr.mxu0 0.0
    %564 = vmatpush1.msra.mxu0 0.0
    %565 = vmatprep.subr.mxu0 0.0
    %566 = vmatpush1.msra.mxu0 0.0
    %567 = vmatprep.subr.mxu0 0.0
    %568 = vmatpush1.msra.mxu0 0.0
    %569 = vmatprep.subr.mxu0 0.0
    %570 = vmatpush1.msra.mxu0 0.0
    %571 = vmatprep.subr.mxu0 0.0
    %572 = vmatpush1.msra.mxu0 0.0
    %573 = vmatprep.subr.mxu0 0.0
    %574 = vmatpush1.msra.mxu0 0.0
    %575 = vmatprep.subr.mxu0 0.0
    %576 = vmatpush1.msra.mxu0 0.0
    %577 = vmatprep.subr.mxu0 0.0
    %578 = vmatpush1.msra.mxu0 0.0
    %579 = vmatprep.subr.mxu0 0.0
    %580 = vmatpush1.msra.mxu0 0.0
    %581 = vmatprep.subr.mxu0 0.0
    %582 = vmatpush1.msra.mxu0 0.0
    %583 = vmatprep.subr.mxu0 0.0
    %584 = vmatpush1.msra.mxu0 0.0
    %585 = vmatprep.subr.mxu0 0.0
    %586 = vmatpush1.msra.mxu0 0.0
    %587 = vmatprep.subr.mxu0 0.0
    %588 = vmatpush1.msra.mxu0 0.0
    %589 = vmatprep.subr.mxu0 0.0
    %590 = vmatpush1.msra.mxu0 0.0
    %591 = vmatprep.subr.mxu0 0.0
    %592 = vmatpush1.msra.mxu0 0.0
    %593 = vmatprep.subr.mxu0 0.0
    %594 = vmatpush1.msra.mxu0 0.0
    %595 = vmatprep.subr.mxu0 0.0
    %596 = vmatpush1.msra.mxu0 0.0
    %597 = vmatprep.subr.mxu0 0.0
    %598 = vmatpush1.msra.mxu0 0.0
    %599 = vmatprep.subr.mxu0 0.0
    %600 = vmatpush1.msra.mxu0 0.0
    %601 = vmatprep.mubr.f32.mxu0 0.0
    %602 = vmatmul.mubr.f32.gmra.mrb[0].mxu0 %v535
    %v603 = vpop.f32.mrb[0].mxu0
    %v604 = vadd.f32 %v531, %v603
    %v605 = vpop.f32.mrb[0].mxu0
    %606 = vdwg.mxu0
    %v607 = vxor.u32 %v604, 2147483648
    %v608 = vmul.f32 %v607, 1.442695
    %v609 = vpow.pop %v608
    %v610 = vadd.f32 %v609, 1.0
    %v611 = vrcp.pop %v610
    %v612 = vmul.f32 1.0, %v611
    %v613 = vmul.f32 %v604, %v612
    %v614 = vld [vmem:[%s8] sm:$0xff]
    %v615 = vld [vmem:[%s8 + $0x8] sm:$0xff]
    %v616 = vld [vmem:[%s8 + $0x10] sm:$0xff]
    %v617 = vld [vmem:[%s8 + $0x18] sm:$0xff]
    %v618 = vld [vmem:[%s9] sm:$0x1]
    %v620 = vlaneseq
    %v621 = vshrl.u32 %v620, 7
    %v622 = vsub.s32 0, %v621
    %v623 = vrot.slane %v618, %v622
    %v626 = vsel %vm533, %v613, 0
    %628 = vmatprep.subr.mxu0 0.0
    %629 = vmatpush1.msra.mxu0 %v614
    %630 = vmatprep.subr.mxu0 0.0
    %631 = vmatpush1.msra.mxu0 %v615
    %632 = vmatprep.subr.mxu0 0.0
    %633 = vmatpush1.msra.mxu0 %v616
    %634 = vmatprep.subr.mxu0 0.0
    %635 = vmatpush1.msra.mxu0 %v617
    %636 = vmatprep.subr.mxu0 0.0
    %637 = vmatpush1.msra.mxu0 0.0
    %638 = vmatprep.subr.mxu0 0.0
    %639 = vmatpush1.msra.mxu0 0.0
    %640 = vmatprep.subr.mxu0 0.0
    %641 = vmatpush1.msra.mxu0 0.0
    %642 = vmatprep.subr.mxu0 0.0
    %643 = vmatpush1.msra.mxu0 0.0
    %644 = vmatprep.subr.mxu0 0.0
    %645 = vmatpush1.msra.mxu0 0.0
    %646 = vmatprep.subr.mxu0 0.0
    %647 = vmatpush1.msra.mxu0 0.0
    %648 = vmatprep.subr.mxu0 0.0
    %649 = vmatpush1.msra.mxu0 0.0
    %650 = vmatprep.subr.mxu0 0.0
    %651 = vmatpush1.msra.mxu0 0.0
    %652 = vmatprep.subr.mxu0 0.0
    %653 = vmatpush1.msra.mxu0 0.0
    %654 = vmatprep.subr.mxu0 0.0
    %655 = vmatpush1.msra.mxu0 0.0
    %656 = vmatprep.subr.mxu0 0.0
    %657 = vmatpush1.msra.mxu0 0.0
    %658 = vmatprep.subr.mxu0 0.0
    %659 = vmatpush1.msra.mxu0 0.0
    %660 = vmatprep.subr.mxu0 0.0
    %661 = vmatpush1.msra.mxu0 0.0
    %662 = vmatprep.subr.mxu0 0.0
    %663 = vmatpush1.msra.mxu0 0.0
    %664 = vmatprep.subr.mxu0 0.0
    %665 = vmatpush1.msra.mxu0 0.0
    %666 = vmatprep.subr.mxu0 0.0
    %667 = vmatpush1.msra.mxu0 0.0
    %668 = vmatprep.subr.mxu0 0.0
    %669 = vmatpush1.msra.mxu0 0.0
    %670 = vmatprep.subr.mxu0 0.0
    %671 = vmatpush1.msra.mxu0 0.0
    %672 = vmatprep.subr.mxu0 0.0
    %673 = vmatpush1.msra.mxu0 0.0
    %674 = vmatprep.subr.mxu0 0.0
    %675 = vmatpush1.msra.mxu0 0.0
    %676 = vmatprep.subr.mxu0 0.0
    %677 = vmatpush1.msra.mxu0 0.0
    %678 = vmatprep.subr.mxu0 0.0
    %679 = vmatpush1.msra.mxu0 0.0
    %680 = vmatprep.subr.mxu0 0.0
    %681 = vmatpush1.msra.mxu0 0.0
    %682 = vmatprep.subr.mxu0 0.0
    %683 = vmatpush1.msra.mxu0 0.0
    %684 = vmatprep.subr.mxu0 0.0
    %685 = vmatpush1.msra.mxu0 0.0
    %686 = vmatprep.subr.mxu0 0.0
    %687 = vmatpush1.msra.mxu0 0.0
    %688 = vmatprep.subr.mxu0 0.0
    %689 = vmatpush1.msra.mxu0 0.0
    %690 = vmatprep.subr.mxu0 0.0
    %691 = vmatpush1.msra.mxu0 0.0
    %692 = vmatprep.mubr.f32.mxu0 0.0
    %693 = vmatmul.mubr.f32.gmra.mrb[0].mxu0 %v626
    %v694 = vpop.f32.mrb[0].mxu0
    %v695 = vadd.f32 %v623, %v694
    %v696 = vpop.f32.mrb[0].mxu0
    %697 = vdwg.mxu0
    %698 = vst.msk [vmem:[#allocation7] sm:$0xff] %vm284, %v695
    // Predicated region
    $region50: #{tpu_custom_call.1} parent=1 // pred_check
      _
    $region51: #{tpu_custom_call.1} parent=1 // pred_check_branch
      %700 = sbr.rel (0) target = $region53
    $region52: #{tpu_custom_call.1} parent=1 // pred_region
      %s702 = ssub.s32 128, 128
      %703 = vsyncadd [#allocation4], %s702
      %s705 = sshll.u32 [#allocation7], 4
      %s706 = int_to_ptr.vmem [resolvable:$true] %s705
      %708 = dma.vmem_to_hbm [thread:$0]  %s706, 128, %s10, [#allocation4]
    $region53: #{tpu_custom_call.1} parent=1 // pred_fallthru
      _
    // Predicated region
    $region54: #{tpu_custom_call.1} parent=1 // pred_check
      _
    $region55: #{tpu_custom_call.1} parent=1 // pred_check_branch
      %710 = sbr.rel (0) target = $region57
    $region56: #{tpu_custom_call.1} parent=1 // pred_region
      %711 = dma.done [#allocation4], 128
    $region57: #{tpu_custom_call.1} parent=1 // pred_fallthru
      _
    %712 = vsyncpa [#allocation3], 1
    %713 = vsyncpa [#allocation6], 1
    %714 = vsyncpa [#allocation4], 1

</llo_original>
